<compile_context>
chip_gen: v7x
topology: tpu7x:2x2x1
jax: 0.10.0
libtpu: 0.0.40
codegen_flags: <defaults>
</compile_context>

<pallas_src>
import math

import jax
import jax.numpy as jnp
from jax.experimental import pallas as pl
from jax.experimental.pallas import tpu as pltpu

HIDDEN = 256  # fixed by the module (Linear(3, 256))


def _round_up(v, m):
    return ((v + m - 1) // m) * m


# ---------------------------------------------------------------------------
# Kernel 1: layer 1.  h = relu(x @ W1 + b1), one pass over the rows.
# Contraction dim is only 3, so an MXU pass would be ~98% padding: do three
# VPU broadcast FMAs instead.  Output is written in the layer-2 compute dtype
# so the bf16 cast happens exactly once per row.
# ---------------------------------------------------------------------------
def _layer1_kernel(x_ref, w1_ref, b1_ref, h_ref):
    x = x_ref[...]                                   # (TN, 3)   f32
    w1 = w1_ref[...]                                 # (3, 256)  f32
    h = b1_ref[...] + x[:, 0:1] * w1[0:1, :]
    h = h + x[:, 1:2] * w1[1:2, :]
    h = h + x[:, 2:3] * w1[2:3, :]
    h_ref[...] = jnp.maximum(h, 0.0).astype(h_ref.dtype)


# ---------------------------------------------------------------------------
# Kernel 2: layer 2.  out = h @ W2[:, j-tile] + b2[j-tile] on the MXU with
# bf16 (or f32) operands and f32 accumulation.  Grid = (K tiles, row tiles),
# K OUTER, so W2 is fetched from HBM exactly once.
# ---------------------------------------------------------------------------
def _layer2_kernel(h_ref, w2_ref, b2_ref, o_ref):
    out = jnp.dot(h_ref[...], w2_ref[...],
                  preferred_element_type=jnp.float32)    # (TN, TK) f32
    out = out + b2_ref[...]                              # bias added in f32
    o_ref[...] = out.astype(o_ref.dtype)


def prepare_params(w1, b1, w2, b2, *, k_tile=4096, compute_dtype=jnp.bfloat16):
    """One-time parameter preparation (call once, NOT per forward step).

    Casts W2 to the MXU compute dtype and pads W2/b2 up to a multiple of the
    K tile so no per-call cast/pad traffic sits on the hot path.
    """
    k = w2.shape[1]
    k_tile = _round_up(min(k_tile, _round_up(k, 128)), 128)
    k_pad = _round_up(k, k_tile)
    w2c = w2.astype(compute_dtype)
    b2f = b2.astype(jnp.float32).reshape(1, -1)
    if k_pad != k:
        w2c = jnp.pad(w2c, ((0, 0), (0, k_pad - k)))
        b2f = jnp.pad(b2f, ((0, 0), (0, k_pad - k)))
    return {
        "w1": w1.astype(jnp.float32),
        "b1": b1.astype(jnp.float32).reshape(1, -1),
        "w2": w2c,
        "b2": b2f,
        "k": k,
        "k_tile": k_tile,
        "compute_dtype": compute_dtype,
    }


def pos_to_weight(x, params, *, row_tile=512, out_dtype=None, buffering=2):
    """x: (N, 3) f32 positions.  Returns (N, K) with K = 3*3*Cin*Cout.

    `params` comes from prepare_params (pre-cast / pre-padded weights).
    `out_dtype=jnp.bfloat16` halves output writeback traffic if the consumer
    tolerates bf16 filter weights.
    """
    n, in_f = x.shape
    assert in_f == 3
    w1, b1, w2, b2 = params["w1"], params["b1"], params["w2"], params["b2"]
    k, k_tile = params["k"], params["k_tile"]
    compute_dtype = params["compute_dtype"]
    hidden = w1.shape[1]
    k_pad = w2.shape[1]
    out_dtype = x.dtype if out_dtype is None else out_dtype

    row_tile = min(row_tile, _round_up(n, 8))
    n_pad = _round_up(n, row_tile)
    if n_pad != n:
        x = jnp.pad(x, ((0, n_pad - n), (0, 0)))

    # ---- layer 1: h = relu(x @ W1 + b1), computed once ---------------------
    h = pl.pallas_call(
        _layer1_kernel,
        out_shape=jax.ShapeDtypeStruct((n_pad, hidden), compute_dtype),
        grid_spec=pltpu.PrefetchScalarGridSpec(
            num_scalar_prefetch=0,
            grid=(n_pad // row_tile,),
            in_specs=[
                pl.BlockSpec((row_tile, in_f), lambda i: (i, 0)),   # x tile
                pl.BlockSpec((in_f, hidden), lambda i: (0, 0)),     # W1
                pl.BlockSpec((1, hidden), lambda i: (0, 0)),        # b1
            ],
            out_specs=pl.BlockSpec((row_tile, hidden), lambda i: (i, 0)),
        ),
        compiler_params=pltpu.CompilerParams(
            dimension_semantics=("parallel",)),
    )(x, w1, b1)

    # ---- layer 2: out = h @ W2 + b2, K-outer grid (W2 read exactly once) ---
    grid = (k_pad // k_tile, n_pad // row_tile)

    itemsize_c = jnp.dtype(compute_dtype).itemsize
    itemsize_o = jnp.dtype(out_dtype).itemsize
    per_step = (row_tile * hidden * itemsize_c       # h tile
                + hidden * k_tile * itemsize_c       # W2 tile
                + k_tile * 4                         # b2 tile
                + row_tile * k_tile * itemsize_o)    # out tile
    # Scoped VMEM sized from the real multi-buffered footprint; capped at
    # 48 MiB so Mosaic keeps headroom under v7x's 64 MiB physical VMEM
    # (v5e/v6e have 128 MiB, so the cap is never binding there).
    vmem_limit = int(min(max(buffering * per_step + (4 << 20), 32 << 20),
                         48 << 20))

    w2_kwargs = {}
    out_kwargs = {}
    if buffering != 2:
        # Optional deeper pipelining if profiling shows exposed W2/out DMA.
        w2_kwargs = dict(pipeline_mode=pl.Buffered(buffering))
        out_kwargs = dict(pipeline_mode=pl.Buffered(buffering))

    out = pl.pallas_call(
        _layer2_kernel,
        out_shape=jax.ShapeDtypeStruct((n_pad, k_pad), out_dtype),
        grid_spec=pltpu.PrefetchScalarGridSpec(
            num_scalar_prefetch=0,
            grid=grid,
            in_specs=[
                pl.BlockSpec((row_tile, hidden), lambda j, i: (i, 0)),   # h
                pl.BlockSpec((hidden, k_tile), lambda j, i: (0, j),
                             **w2_kwargs),                               # W2 tile
                pl.BlockSpec((1, k_tile), lambda j, i: (0, j)),          # b2 tile
            ],
            out_specs=pl.BlockSpec((row_tile, k_tile), lambda j, i: (i, j),
                                   **out_kwargs),
        ),
        compiler_params=pltpu.CompilerParams(
            dimension_semantics=("parallel", "parallel"),
            vmem_limit_bytes=vmem_limit),
    )(h, w2, b2)

    if (n_pad, k_pad) != (n, k):
        out = out[:n, :k]
    return out


def init_params(key, in_channels, out_channels, dtype=jnp.float32):
    """Deterministic PyTorch-style (kaiming-uniform-ish) init for the two Linears."""
    k_out = 3 * 3 * in_channels * out_channels
    k1, k2, k3, k4 = jax.random.split(key, 4)
    bound1 = 1.0 / math.sqrt(3)
    bound2 = 1.0 / math.sqrt(HIDDEN)
    # Stored as (in_features, out_features) so the kernel does x @ W.
    w1 = jax.random.uniform(k1, (3, HIDDEN), dtype, -bound1, bound1)
    b1 = jax.random.uniform(k2, (1, HIDDEN), dtype, -bound1, bound1)
    w2 = jax.random.uniform(k3, (HIDDEN, k_out), dtype, -bound2, bound2)
    b2 = jax.random.uniform(k4, (1, k_out), dtype, -bound2, bound2)
    return w1, b1, w2, b2


if __name__ == "__main__":
    key = jax.random.PRNGKey(0)

    # --- small config matching the module's __init__ ------------------------
    in_channels, out_channels = 4, 4          # K = 3*3*4*4 = 144 (padded to 256)
    n_positions = 32
    kx, kp = jax.random.split(key)
    x = jax.random.uniform(kx, (n_positions, 3), jnp.float32)
    w1, b1, w2, b2 = init_params(kp, in_channels, out_channels)

    ref = jnp.maximum(x @ w1 + b1, 0.0) @ w2 + b2

    # f32 compute path: tight numerical check (numerics-validation mode).
    prep_f32 = prepare_params(w1, b1, w2, b2, compute_dtype=jnp.float32)
    out_f32 = jax.block_until_ready(pos_to_weight(x, prep_f32))
    assert out_f32.shape == (n_positions, 3 * 3 * in_channels * out_channels)
    assert jnp.allclose(out_f32, ref, atol=1e-5, rtol=1e-5)

    # bf16 operands / f32 accumulation (production path): loose check.
    prep_bf16 = prepare_params(w1, b1, w2, b2)
    out_bf16 = jax.block_until_ready(pos_to_weight(x, prep_bf16))
    assert out_bf16.shape == ref.shape and out_bf16.dtype == jnp.float32
    assert jnp.allclose(out_bf16, ref, atol=2e-2, rtol=2e-2)

    # bf16 output option (halves writeback traffic at realistic N*K).
    out_b16o = jax.block_until_ready(
        pos_to_weight(x, prep_bf16, out_dtype=jnp.bfloat16))
    assert out_b16o.dtype == jnp.bfloat16 and out_b16o.shape == ref.shape
    assert jnp.allclose(out_b16o.astype(jnp.float32), ref, atol=5e-2, rtol=5e-2)

    # --- larger config exercising both grid axes + padding (K-outer grid) ---
    in_channels2, out_channels2 = 8, 8        # K = 576 -> padded to 768 (k_tile=256)
    n2 = 300                                  # -> padded to 384 rows (row_tile=128)
    kx2, kp2 = jax.random.split(kp)
    x2 = jax.random.uniform(kx2, (n2, 3), jnp.float32)
    p2 = init_params(kp2, in_channels2, out_channels2)
    ref2 = jnp.maximum(x2 @ p2[0] + p2[1], 0.0) @ p2[2] + p2[3]
    prep2 = prepare_params(*p2, k_tile=256)
    out2 = jax.block_until_ready(pos_to_weight(x2, prep2, row_tile=128))
    assert out2.shape == ref2.shape
    assert jnp.allclose(out2, ref2, atol=2e-2, rtol=2e-2)

    print("KERNEL_OK")
</pallas_src>

<mosaic_0001>
module attributes {stable_mosaic.version = 11 : i64} {
  func.func @_layer1_kernel(%arg0: i32, %arg1: memref<32x3xf32, #tpu.memory_space<vmem>>, %arg2: memref<3x256xf32, #tpu.memory_space<vmem>>, %arg3: memref<1x256xf32, #tpu.memory_space<vmem>>, %arg4: memref<32x256xf32, #tpu.memory_space<vmem>>) attributes {dimension_semantics = [#tpu.dimension_semantics<parallel>], iteration_bounds = array<i64: 1>, scalar_prefetch = 0 : i64, scratch_operands = 0 : i64, tpu.core_type = #tpu.core_type<tc>, window_params = [{transform_indices = @transform_0, window_bounds = array<i64: 32, 3>}, {pipeline_mode = #tpu.pipeline_mode<synchronous>, transform_indices = @transform_1, window_bounds = array<i64: 3, 256>}, {pipeline_mode = #tpu.pipeline_mode<synchronous>, transform_indices = @transform_2, window_bounds = array<i64: 1, 256>}, {transform_indices = @transform_3, window_bounds = array<i64: 32, 256>}]} {
    %c0 = arith.constant 0 : index
    %c0_0 = arith.constant 0 : index
    %0 = vector.load %arg1[%c0, %c0_0] : memref<32x3xf32, #tpu.memory_space<vmem>>, vector<32x3xf32>
    %c0_1 = arith.constant 0 : index
    %c0_2 = arith.constant 0 : index
    %1 = vector.load %arg2[%c0_1, %c0_2] : memref<3x256xf32, #tpu.memory_space<vmem>>, vector<3x256xf32>
    %c0_3 = arith.constant 0 : index
    %c0_4 = arith.constant 0 : index
    %2 = vector.load %arg3[%c0_3, %c0_4] : memref<1x256xf32, #tpu.memory_space<vmem>>, vector<1x256xf32>
    %3 = vector.extract_strided_slice %0 {offsets = [0, 0], sizes = [32, 1], strides = [1, 1]} : vector<32x3xf32> to vector<32x1xf32>
    %4 = vector.extract_strided_slice %1 {offsets = [0, 0], sizes = [1, 256], strides = [1, 1]} : vector<3x256xf32> to vector<1x256xf32>
    %5 = vector.broadcast %3 : vector<32x1xf32> to vector<32x256xf32>
    %6 = vector.broadcast %4 : vector<1x256xf32> to vector<32x256xf32>
    %7 = arith.mulf %5, %6 : vector<32x256xf32>
    %8 = vector.broadcast %2 : vector<1x256xf32> to vector<32x256xf32>
    %9 = arith.addf %8, %7 : vector<32x256xf32>
    %10 = vector.extract_strided_slice %0 {offsets = [0, 1], sizes = [32, 1], strides = [1, 1]} : vector<32x3xf32> to vector<32x1xf32>
    %11 = vector.extract_strided_slice %1 {offsets = [1, 0], sizes = [1, 256], strides = [1, 1]} : vector<3x256xf32> to vector<1x256xf32>
    %12 = vector.broadcast %10 : vector<32x1xf32> to vector<32x256xf32>
    %13 = vector.broadcast %11 : vector<1x256xf32> to vector<32x256xf32>
    %14 = arith.mulf %12, %13 : vector<32x256xf32>
    %15 = arith.addf %9, %14 : vector<32x256xf32>
    %16 = vector.extract_strided_slice %0 {offsets = [0, 2], sizes = [32, 1], strides = [1, 1]} : vector<32x3xf32> to vector<32x1xf32>
    %17 = vector.extract_strided_slice %1 {offsets = [2, 0], sizes = [1, 256], strides = [1, 1]} : vector<3x256xf32> to vector<1x256xf32>
    %18 = vector.broadcast %16 : vector<32x1xf32> to vector<32x256xf32>
    %19 = vector.broadcast %17 : vector<1x256xf32> to vector<32x256xf32>
    %20 = arith.mulf %18, %19 : vector<32x256xf32>
    %21 = arith.addf %15, %20 : vector<32x256xf32>
    %cst = arith.constant 0.000000e+00 : f32
    %22 = vector.broadcast %cst : f32 to vector<32x256xf32>
    %23 = arith.maximumf %21, %22 : vector<32x256xf32>
    %c0_5 = arith.constant 0 : index
    %c0_6 = arith.constant 0 : index
    %24 = vector.load %arg4[%c0_5, %c0_6] : memref<32x256xf32, #tpu.memory_space<vmem>>, vector<32x256xf32>
    tpu.vector_store %arg4[%c0_5, %c0_6], %23 {strides = array<i32>} : memref<32x256xf32, #tpu.memory_space<vmem>>, vector<32x256xf32>,
    return
  }
  func.func @transform_0(%arg0: i32) -> (i32, i32) {
    %c0_i32 = arith.constant 0 : i32
    %c0_i32_0 = arith.constant 0 : i32
    return %arg0, %c0_i32 : i32, i32
  }
  func.func @transform_1(%arg0: i32) -> (i32, i32) {
    %c0_i32 = arith.constant 0 : i32
    %c0_i32_0 = arith.constant 0 : i32
    %c0_i32_1 = arith.constant 0 : i32
    return %c0_i32, %c0_i32_0 : i32, i32
  }
  func.func @transform_2(%arg0: i32) -> (i32, i32) {
    %c0_i32 = arith.constant 0 : i32
    %c0_i32_0 = arith.constant 0 : i32
    %c0_i32_1 = arith.constant 0 : i32
    return %c0_i32, %c0_i32_0 : i32, i32
  }
  func.func @transform_3(%arg0: i32) -> (i32, i32) {
    %c0_i32 = arith.constant 0 : i32
    %c0_i32_0 = arith.constant 0 : i32
    return %arg0, %c0_i32 : i32, i32
  }
}

</mosaic_0001>

<llo_original>
// kernel: tpu_custom_call.1
$region0: #{tpu_custom_call.1}
  #allocation0 [shape = 'u32[]', space=smem, size = 0x4, offset = 0x4, fixed_abs, tag = 'smem constant byte address 0x4 - core index']
  #allocation1 [shape = 'u32[144,128]{1,0:T(1,128)}', space=vmem, size = 0x12000, scoped, tag = 'internal scratch']
  %s0 = inlined_call_operand.vmem [shape: f32[32,3], index: 0, kind: input, shape index: {}]
  %s1 = inlined_call_operand.vmem [shape: f32[3,256], index: 1, kind: input, shape index: {}]
  %s2 = inlined_call_operand.vmem [shape: f32[1,256], index: 2, kind: input, shape index: {}]
  %s3 = inlined_call_operand.hbm [shape: f32[32,256], index: 3, kind: output, shape index: {}]
  %s4 = sld [smem:[#allocation0]]
  $region22: #{tpu_custom_call.1} parent=0
    _
  %s6 = ssub.s32 1, %s4
  %s7 = scalar_select 0, %s6, %s4
  $region1: #{tpu_custom_call.1} parent=0
    #allocation2 [shape = 'u8[32768]{0}', space=vmem, size = 0x8000, scoped, tag = 'output window, operand 0, single buffered']
    #allocation3 [shape = 's32[1]{0}', space=sflag, size = 0x4, scoped, tag = 'scoped memory for tpu_custom_call.1']
    %8 = vsyncpa [#allocation3], 0
    // Predicated region
    $region2: #{tpu_custom_call.1} parent=1 // pred_check
      _
    $region3: #{tpu_custom_call.1} parent=1 // pred_check_branch
      %10 = sbr.rel (0) target = $region5
    $region4: #{tpu_custom_call.1} parent=1 // pred_region
      _
    $region5: #{tpu_custom_call.1} parent=1 // pred_fallthru
      _
    // Predicated region
    $region6: #{tpu_custom_call.1} parent=1 // pred_check
      _
    $region7: #{tpu_custom_call.1} parent=1 // pred_check_branch
      %12 = sbr.rel (0) target = $region9
    $region8: #{tpu_custom_call.1} parent=1 // pred_region
      _
    $region9: #{tpu_custom_call.1} parent=1 // pred_fallthru
      _
    // Predicated region
    $region10: #{tpu_custom_call.1} parent=1 // pred_check
      _
    $region11: #{tpu_custom_call.1} parent=1 // pred_check_branch
      %14 = sbr.rel (0) target = $region13
    $region12: #{tpu_custom_call.1} parent=1 // pred_region
      _
    $region13: #{tpu_custom_call.1} parent=1 // pred_fallthru
      _
    %v15 = vld [vmem:[%s0] sm:$0xff]
    %v16 = vld [vmem:[%s0 + $0x8] sm:$0xff]
    %v17 = vld [vmem:[%s0 + $0x10] sm:$0xff]
    %v18 = vld [vmem:[%s0 + $0x18] sm:$0xff]
    %v19 = vld [vmem:[%s1] sm:$0x77]
    %v20 = vld [vmem:[%s2] sm:$0x3]
    %22 = vset.pattern.permute.xlu0 0
    %23 = vperm.xlu0 %22, %v15
    %v24 = vpop.permute.xlu0 %23
    %27 = vset.pattern.permute.xlu0 0
    %28 = vperm.xlu0 %27, %v16
    %v29 = vpop.permute.xlu0 %28
    %32 = vset.pattern.permute.xlu0 0
    %33 = vperm.xlu0 %32, %v17
    %v34 = vpop.permute.xlu0 %33
    %37 = vset.pattern.permute.xlu0 0
    %38 = vperm.xlu0 %37, %v18
    %v39 = vpop.permute.xlu0 %38
    %v42 = vlaneseq
    %v43 = vshrl.u32 %v42, 7
    %v44 = vsub.s32 0, %v43
    %v45 = vrot.slane %v19, %v44
    %v46 = vlaneseq
    %v47 = vshrl.u32 %v46, 7
    %v48 = vsub.s32 4, %v47
    %v49 = vrot.slane %v19, %v48
    %v52 = vlaneseq
    %v53 = vshrl.u32 %v52, 7
    %v54 = vsub.s32 0, %v53
    %v55 = vrot.slane %v45, %v54
    %v56 = vlaneseq
    %v57 = vshrl.u32 %v56, 7
    %v58 = vsub.s32 0, %v57
    %v59 = vrot.slane %v49, %v58
    %v60 = vmul.f32 %v24, %v55
    %v61 = vmul.f32 %v24, %v59
    %v62 = vmul.f32 %v29, %v55
    %v63 = vmul.f32 %v29, %v59
    %v64 = vmul.f32 %v34, %v55
    %v65 = vmul.f32 %v34, %v59
    %v66 = vmul.f32 %v39, %v55
    %v67 = vmul.f32 %v39, %v59
    %v69 = vlaneseq
    %v70 = vshrl.u32 %v69, 7
    %v71 = vsub.s32 0, %v70
    %v72 = vrot.slane %v20, %v71
    %v73 = vlaneseq
    %v74 = vshrl.u32 %v73, 7
    %v75 = vsub.s32 1, %v74
    %v76 = vrot.slane %v20, %v75
    %v79 = vadd.f32 %v72, %v60
    %v80 = vadd.f32 %v76, %v61
    %v81 = vadd.f32 %v72, %v62
    %v82 = vadd.f32 %v76, %v63
    %v83 = vadd.f32 %v72, %v64
    %v84 = vadd.f32 %v76, %v65
    %v85 = vadd.f32 %v72, %v66
    %v86 = vadd.f32 %v76, %v67
    %87 = vset.pattern.permute.xlu0 1
    %88 = vperm.xlu0 %87, %v15
    %v89 = vpop.permute.xlu0 %88
    %91 = vset.pattern.permute.xlu0 1
    %92 = vperm.xlu0 %91, %v16
    %v93 = vpop.permute.xlu0 %92
    %95 = vset.pattern.permute.xlu0 1
    %96 = vperm.xlu0 %95, %v17
    %v97 = vpop.permute.xlu0 %96
    %99 = vset.pattern.permute.xlu0 1
    %100 = vperm.xlu0 %99, %v18
    %v101 = vpop.permute.xlu0 %100
    %v103 = vlaneseq
    %v104 = vshrl.u32 %v103, 7
    %v105 = vsub.s32 1, %v104
    %v106 = vrot.slane %v19, %v105
    %v107 = vlaneseq
    %v108 = vshrl.u32 %v107, 7
    %v109 = vsub.s32 5, %v108
    %v110 = vrot.slane %v19, %v109
    %v113 = vlaneseq
    %v114 = vshrl.u32 %v113, 7
    %v115 = vsub.s32 1, %v114
    %v116 = vrot.slane %v106, %v115
    %v117 = vlaneseq
    %v118 = vshrl.u32 %v117, 7
    %v119 = vsub.s32 1, %v118
    %v120 = vrot.slane %v110, %v119
    %v121 = vmul.f32 %v89, %v116
    %v122 = vmul.f32 %v89, %v120
    %v123 = vmul.f32 %v93, %v116
    %v124 = vmul.f32 %v93, %v120
    %v125 = vmul.f32 %v97, %v116
    %v126 = vmul.f32 %v97, %v120
    %v127 = vmul.f32 %v101, %v116
    %v128 = vmul.f32 %v101, %v120
    %v129 = vadd.f32 %v79, %v121
    %v130 = vadd.f32 %v80, %v122
    %v131 = vadd.f32 %v81, %v123
    %v132 = vadd.f32 %v82, %v124
    %v133 = vadd.f32 %v83, %v125
    %v134 = vadd.f32 %v84, %v126
    %v135 = vadd.f32 %v85, %v127
    %v136 = vadd.f32 %v86, %v128
    %137 = vset.pattern.permute.xlu0 2
    %138 = vperm.xlu0 %137, %v15
    %v139 = vpop.permute.xlu0 %138
    %141 = vset.pattern.permute.xlu0 2
    %142 = vperm.xlu0 %141, %v16
    %v143 = vpop.permute.xlu0 %142
    %145 = vset.pattern.permute.xlu0 2
    %146 = vperm.xlu0 %145, %v17
    %v147 = vpop.permute.xlu0 %146
    %149 = vset.pattern.permute.xlu0 2
    %150 = vperm.xlu0 %149, %v18
    %v151 = vpop.permute.xlu0 %150
    %v153 = vlaneseq
    %v154 = vshrl.u32 %v153, 7
    %v155 = vsub.s32 2, %v154
    %v156 = vrot.slane %v19, %v155
    %v157 = vlaneseq
    %v158 = vshrl.u32 %v157, 7
    %v159 = vsub.s32 6, %v158
    %v160 = vrot.slane %v19, %v159
    %v163 = vlaneseq
    %v164 = vshrl.u32 %v163, 7
    %v165 = vsub.s32 2, %v164
    %v166 = vrot.slane %v156, %v165
    %v167 = vlaneseq
    %v168 = vshrl.u32 %v167, 7
    %v169 = vsub.s32 2, %v168
    %v170 = vrot.slane %v160, %v169
    %v171 = vmul.f32 %v139, %v166
    %v172 = vmul.f32 %v139, %v170
    %v173 = vmul.f32 %v143, %v166
    %v174 = vmul.f32 %v143, %v170
    %v175 = vmul.f32 %v147, %v166
    %v176 = vmul.f32 %v147, %v170
    %v177 = vmul.f32 %v151, %v166
    %v178 = vmul.f32 %v151, %v170
    %v179 = vadd.f32 %v129, %v171
    %v180 = vadd.f32 %v130, %v172
    %v181 = vadd.f32 %v131, %v173
    %v182 = vadd.f32 %v132, %v174
    %v183 = vadd.f32 %v133, %v175
    %v184 = vadd.f32 %v134, %v176
    %v185 = vadd.f32 %v135, %v177
    %v186 = vadd.f32 %v136, %v178
    %v187 = vmax.f32 %v179, 0.0
    %v188 = vmax.f32 %v180, 0.0
    %v189 = vmax.f32 %v181, 0.0
    %v190 = vmax.f32 %v182, 0.0
    %v191 = vmax.f32 %v183, 0.0
    %v192 = vmax.f32 %v184, 0.0
    %v193 = vmax.f32 %v185, 0.0
    %v194 = vmax.f32 %v186, 0.0
    %195 = vst [vmem:[#allocation2] sm:$0xff] %v187
    %196 = vst [vmem:[#allocation2 + $0x8] sm:$0xff] %v188
    %197 = vst [vmem:[#allocation2 + $0x10] sm:$0xff] %v189
    %198 = vst [vmem:[#allocation2 + $0x18] sm:$0xff] %v190
    %199 = vst [vmem:[#allocation2 + $0x20] sm:$0xff] %v191
    %200 = vst [vmem:[#allocation2 + $0x28] sm:$0xff] %v192
    %201 = vst [vmem:[#allocation2 + $0x30] sm:$0xff] %v193
    %202 = vst [vmem:[#allocation2 + $0x38] sm:$0xff] %v194
    // Predicated region
    $region14: #{tpu_custom_call.1} parent=1 // pred_check
      _
    $region15: #{tpu_custom_call.1} parent=1 // pred_check_branch
      %204 = sbr.rel (0) target = $region17
    $region16: #{tpu_custom_call.1} parent=1 // pred_region
      %s206 = ssub.s32 1024, 1024
      %207 = vsyncadd [#allocation3], %s206
      %s208 = sshll.u32 [#allocation2], 4
      %s209 = int_to_ptr.vmem [resolvable:$true] %s208
      %214 = dma.vmem_to_hbm [thread:$0]  %s209, 1024, %s3, [#allocation3], 256, 256, 16
    $region17: #{tpu_custom_call.1} parent=1 // pred_fallthru
      _
    // Predicated region
    $region18: #{tpu_custom_call.1} parent=1 // pred_check
      _
    $region19: #{tpu_custom_call.1} parent=1 // pred_check_branch
      %216 = sbr.rel (0) target = $region21
    $region20: #{tpu_custom_call.1} parent=1 // pred_region
      %217 = dma.done [#allocation3], 1024
    $region21: #{tpu_custom_call.1} parent=1 // pred_fallthru
      _
    %218 = vsyncpa [#allocation3], 1

</llo_original>
